<compile_context>
chip_gen: v5e
topology: v5e:2x2
jax: 0.10.0
libtpu: 0.0.40
codegen_flags: <defaults>
</compile_context>

<pallas_src>
import functools

import jax
import jax.numpy as jnp
from jax.experimental import pallas as pl
from jax.experimental.pallas import tpu as pltpu

_LANES = 128


def _ada_kernel(x_ref, o_ref, *, alpha):
    # Load native-dtype tile, upcast to f32 in-register for the EUP exp.
    x = x_ref[...].astype(jnp.float32)
    # max(x,0)*exp(-a*x) == where(x>0, x*exp(-a*x), 0); the where form avoids
    # the 0 * inf -> NaN edge case for very negative x.
    y = jnp.where(x > 0.0, x * jnp.exp(x * (-alpha)), 0.0)
    o_ref[...] = y.astype(o_ref.dtype)


def ada_forward(x, *, alpha=0.5, block_rows=2048):
    """Apply the ADA activation elementwise. x: any shape, f32 or bf16."""
    orig_shape = x.shape
    dtype = x.dtype
    total = x.size
    itemsize = jnp.dtype(dtype).itemsize

    # Flatten to a lane-dense (rows, 128) slab. Only pad when the flat length
    # is not a multiple of 128 (rare for conv activations).
    x_flat = jnp.ravel(x)
    rem = total % _LANES
    padded = rem != 0
    if padded:
        x_flat = jnp.pad(x_flat, (0, _LANES - rem))
    rows = x_flat.size // _LANES
    x2d = x_flat.reshape(rows, _LANES)

    # Sublane packing: 8 rows/vreg for 4-byte dtypes, 16 for 2-byte, 32 for 1-byte.
    sublane = {4: 8, 2: 16, 1: 32}.get(itemsize, 8)
    if rows <= block_rows:
        br = rows                              # single block == full array dims (always legal)
    else:
        br = max(sublane, (block_rows // sublane) * sublane)  # multiple of sublane packing

    grid = (pl.cdiv(rows, br),)                # ragged tail handled by masked stores

    kernel = functools.partial(_ada_kernel, alpha=float(alpha))

    out2d = pl.pallas_call(
        kernel,
        out_shape=jax.ShapeDtypeStruct((rows, _LANES), dtype),
        grid_spec=pltpu.PrefetchScalarGridSpec(
            num_scalar_prefetch=0,
            grid=grid,
            in_specs=[pl.BlockSpec((br, _LANES), lambda i: (i, 0))],
            out_specs=pl.BlockSpec((br, _LANES), lambda i: (i, 0)),
        ),
        compiler_params=pltpu.CompilerParams(
            dimension_semantics=("parallel",),     # shards grid across TCs on v7x
            vmem_limit_bytes=32 * 1024 * 1024,     # headroom for double-buffered in+out
        ),
        cost_estimate=pl.CostEstimate(
            flops=3 * total,
            transcendentals=total,
            bytes_accessed=2 * total * itemsize,
        ),
    )(x2d)

    if padded:
        out = out2d.reshape(-1)[:total].reshape(orig_shape)
    else:
        out = out2d.reshape(orig_shape)
    return out


def ada_reference(x, alpha=0.5):
    xf = x.astype(jnp.float32)
    return (jnp.maximum(xf, 0.0) * jnp.exp(-xf * alpha)).astype(x.dtype)


if __name__ == "__main__":
    key = jax.random.PRNGKey(0)
    k1, k2, k3 = jax.random.split(key, 3)

    # 1) Primary case: f32 NCHW, flat size multiple of 128 (no pad path).
    x1 = jax.random.normal(k1, (2, 4, 16, 16), dtype=jnp.float32)
    o1 = jax.block_until_ready(ada_forward(x1))
    r1 = ada_reference(x1)
    assert o1.shape == x1.shape and o1.dtype == x1.dtype
    assert jnp.allclose(o1, r1, atol=1e-6, rtol=1e-6), "f32 mismatch vs reference"

    # 2) bf16 input with size NOT a multiple of 128 (exercises pad + dtype passthrough).
    x2 = jax.random.normal(k2, (3, 5, 7, 11), dtype=jnp.float32).astype(jnp.bfloat16)
    o2 = jax.block_until_ready(ada_forward(x2))
    r2 = ada_reference(x2)
    assert o2.shape == x2.shape and o2.dtype == jnp.bfloat16
    assert jnp.allclose(o2.astype(jnp.float32), r2.astype(jnp.float32),
                        atol=1e-2, rtol=1e-2), "bf16 mismatch vs reference"

    # 3) Multi-step grid with a ragged last row-block (small block_rows override).
    x3 = jax.random.normal(k3, (2, 4, 32, 36), dtype=jnp.float32)  # 9216 elems -> 72 rows
    o3 = jax.block_until_ready(ada_forward(x3, block_rows=64))     # grid=2, tail of 8 rows
    r3 = ada_reference(x3)
    assert o3.shape == x3.shape and o3.dtype == x3.dtype
    assert jnp.allclose(o3, r3, atol=1e-6, rtol=1e-6), "ragged-grid mismatch vs reference"

    print("KERNEL_OK")
</pallas_src>

<mosaic_0001>
module attributes {stable_mosaic.version = 11 : i64} {
  func.func @_ada_kernel(%arg0: i32, %arg1: memref<16x128xf32, #tpu.memory_space<vmem>>, %arg2: memref<16x128xf32, #tpu.memory_space<vmem>>) attributes {dimension_semantics = [#tpu.dimension_semantics<parallel>], iteration_bounds = array<i64: 1>, scalar_prefetch = 0 : i64, scratch_operands = 0 : i64, tpu.core_type = #tpu.core_type<tc>, window_params = [{transform_indices = @transform_0, window_bounds = array<i64: 16, 128>}, {transform_indices = @transform_1, window_bounds = array<i64: 16, 128>}]} {
    %c0 = arith.constant 0 : index
    %c0_0 = arith.constant 0 : index
    %0 = vector.load %arg1[%c0, %c0_0] : memref<16x128xf32, #tpu.memory_space<vmem>>, vector<16x128xf32>
    %cst = arith.constant 0.000000e+00 : f32
    %1 = vector.broadcast %cst : f32 to vector<16x128xf32>
    %2 = arith.cmpf ogt, %0, %1 : vector<16x128xf32>
    %cst_1 = arith.constant -5.000000e-01 : f32
    %3 = vector.broadcast %cst_1 : f32 to vector<16x128xf32>
    %4 = arith.mulf %0, %3 : vector<16x128xf32>
    %5 = math.exp %4 : vector<16x128xf32>
    %6 = arith.mulf %0, %5 : vector<16x128xf32>
    %cst_2 = arith.constant 0.000000e+00 : f32
    %7 = vector.broadcast %cst_2 : f32 to vector<16x128xf32>
    %8 = arith.select %2, %6, %7 : vector<16x128xi1>, vector<16x128xf32>
    %c0_3 = arith.constant 0 : index
    %c0_4 = arith.constant 0 : index
    %9 = vector.load %arg2[%c0_3, %c0_4] : memref<16x128xf32, #tpu.memory_space<vmem>>, vector<16x128xf32>
    tpu.vector_store %arg2[%c0_3, %c0_4], %8 {strides = array<i32>} : memref<16x128xf32, #tpu.memory_space<vmem>>, vector<16x128xf32>,
    return
  }
  func.func @transform_0(%arg0: i32) -> (i32, i32) {
    %c0_i32 = arith.constant 0 : i32
    %c0_i32_0 = arith.constant 0 : i32
    return %arg0, %c0_i32 : i32, i32
  }
  func.func @transform_1(%arg0: i32) -> (i32, i32) {
    %c0_i32 = arith.constant 0 : i32
    %c0_i32_0 = arith.constant 0 : i32
    return %arg0, %c0_i32 : i32, i32
  }
}

</mosaic_0001>

<llo_original>
// kernel: tpu_custom_call.1
$region0: #{tpu_custom_call.1}
  #allocation0 [shape = 'u32[]', space=smem, size = 0x4, offset = 0x4, fixed_abs, tag = 'smem constant byte address 0x4 - core index']
  #allocation1 [shape = 'u32[72,128]{1,0:T(1,128)}', space=vmem, size = 0x9000, scoped, tag = 'internal scratch']
  %s0 = inlined_call_operand.hbm [shape: f32[16,128], index: 0, kind: input, shape index: {}]
  %s1 = inlined_call_operand.hbm [shape: f32[16,128], index: 1, kind: output, shape index: {}]
  %s2 = sld [smem:[#allocation0]]
  $region18: #{tpu_custom_call.1} parent=0
    _
  %s4 = ssub.s32 1, %s2
  %s5 = scalar_select 0, %s4, %s2
  $region1: #{tpu_custom_call.1} parent=0
    #allocation2 [shape = 'u8[8192]{0}', space=vmem, size = 0x2000, scoped, tag = 'input window, operand 0, single buffered']
    #allocation3 [shape = 's32[1]{0}', space=sflag, size = 0x4, scoped, tag = 'scoped memory for tpu_custom_call.1']
    #allocation4 [shape = 's32[1]{0}', space=sflag, size = 0x4, scoped, tag = 'scoped memory for tpu_custom_call.1']
    #allocation5 [shape = 'u8[8192]{0}', space=vmem, size = 0x2000, scoped, tag = 'output window, operand 0, single buffered']
    %6 = vsyncpa [#allocation3], 0
    %7 = vsyncpa [#allocation4], 0
    // Predicated region
    $region2: #{tpu_custom_call.1} parent=1 // pred_check
      _
    $region3: #{tpu_custom_call.1} parent=1 // pred_check_branch
      %9 = sbr.rel (0) target = $region5
    $region4: #{tpu_custom_call.1} parent=1 // pred_region
      %11 = vsyncadd [#allocation3], 0
      %s12 = sshll.u32 %s0, 4
      %s13 = int_to_ptr.hbm [resolvable:$true] %s12
      %s14 = sshll.u32 [#allocation2], 4
      %s15 = int_to_ptr.vmem [resolvable:$true] %s14
      %20 = dma.hbm_to_vmem [thread:$0]  %s13, 256, %s15, [#allocation3], 128, 128, 8
    $region5: #{tpu_custom_call.1} parent=1 // pred_fallthru
      _
    // Predicated region
    $region6: #{tpu_custom_call.1} parent=1 // pred_check
      _
    $region7: #{tpu_custom_call.1} parent=1 // pred_check_branch
      %22 = sbr.rel (0) target = $region9
    $region8: #{tpu_custom_call.1} parent=1 // pred_region
      %24 = dma.done [#allocation3], 256
    $region9: #{tpu_custom_call.1} parent=1 // pred_fallthru
      _
    %v25 = vld [vmem:[#allocation2] sm:$0xff]
    %v26 = vld [vmem:[#allocation2 + $0x8] sm:$0xff]
    %vm27 = vcmp.gt.f32.partialorder %v25, 0.0
    %vm28 = vcmp.gt.f32.partialorder %v26, 0.0
    %v29 = vmul.f32 %v25, -0.5
    %v30 = vmul.f32 %v26, -0.5
    %v31 = vmul.f32 %v29, 1.442695
    %v32 = vpow.pop %v31
    %v33 = vmul.f32 %v30, 1.442695
    %v34 = vpow.pop %v33
    %v35 = vmul.f32 %v25, %v32
    %v36 = vmul.f32 %v26, %v34
    %v37 = vsel %vm27, %v35, 0.0
    %v38 = vsel %vm28, %v36, 0.0
    %39 = vst [vmem:[#allocation5] sm:$0xff] %v37
    %40 = vst [vmem:[#allocation5 + $0x8] sm:$0xff] %v38
    // Predicated region
    $region10: #{tpu_custom_call.1} parent=1 // pred_check
      _
    $region11: #{tpu_custom_call.1} parent=1 // pred_check_branch
      %42 = sbr.rel (0) target = $region13
    $region12: #{tpu_custom_call.1} parent=1 // pred_region
      %44 = vsyncadd [#allocation4], 0
      %s45 = sshll.u32 [#allocation5], 4
      %s46 = int_to_ptr.vmem [resolvable:$true] %s45
      %s47 = sshll.u32 %s1, 4
      %s48 = int_to_ptr.hbm [resolvable:$true] %s47
      %53 = dma.vmem_to_hbm [thread:$0]  %s46, 256, %s48, [#allocation4], 128, 128, 8
    $region13: #{tpu_custom_call.1} parent=1 // pred_fallthru
      _
    // Predicated region
    $region14: #{tpu_custom_call.1} parent=1 // pred_check
      _
    $region15: #{tpu_custom_call.1} parent=1 // pred_check_branch
      %55 = sbr.rel (0) target = $region17
    $region16: #{tpu_custom_call.1} parent=1 // pred_region
      %57 = dma.done [#allocation4], 256
    $region17: #{tpu_custom_call.1} parent=1 // pred_fallthru
      _
    %58 = vsyncpa [#allocation3], 1
    %59 = vsyncpa [#allocation4], 1

</llo_original>
